<compile_context>
chip_gen: v5e
topology: v5e:2x2
jax: 0.10.0
libtpu: 0.0.40
codegen_flags: <defaults>
</compile_context>

<pallas_src>
import jax
import jax.numpy as jnp
from jax.experimental import pallas as pl
from jax.experimental.pallas import tpu as pltpu

EPS = 0.001
_LANES = 128
_VMEM_BUDGET_BYTES = 40 * 1024 * 1024   # tile-sizing budget (fits v7x 64 MiB VMEM)
_VMEM_LIMIT_BYTES = 48 * 1024 * 1024    # scoped VMEM limit handed to Mosaic
_MAX_TS = 512                           # <= 512 * 128 = 65536 pixels per grid step


def _cdiv(a, b):
    return (a + b - 1) // b


def _round_up(x, m):
    return _cdiv(x, m) * m


def _pick_tile_rows(c, in_itemsize):
    """Largest sublane count TS (multiple of 8) whose working set fits the budget."""
    per_px = (2 * c * in_itemsize      # double-buffered logits block
              + 2 * 4 + 2 * 4          # double-buffered targets (i32) + weights
              + 4 * (2 * c + 1)        # persistent f32 accumulators
              + 4 * (2 * c + 8))       # conservative in-body f32 temporaries
    max_px = _VMEM_BUDGET_BYTES // per_px
    ts = (max_px // _LANES) // 8 * 8
    return max(8, min(_MAX_TS, ts))


def combined_loss(y_pred, y_true, weights, weights_list=None,
                  weight_dice=1.0, weight_ce=1.0, spatial_chunks=None):
    """JAX/Pallas equivalent of TestCombinedLoss.forward.

    y_pred  : (N, C, H, W) float logits (f32 or bf16; upcast happens in-kernel)
    y_true  : (N, H, W)    integer class labels in [0, C)
    weights : (N, H, W)    per-pixel CE weights
    weights_list : unused by the reference forward pass (kept for parity)
    """
    del weights_list  # not used by the PyTorch forward
    N, C, H, W = y_pred.shape
    HW = H * W

    if spatial_chunks is None:
        spatial_chunks = 1 if N % 2 == 0 else 2   # keep v7x megacore busy for odd N
    S = int(spatial_chunks)

    in_itemsize = jnp.dtype(y_pred.dtype).itemsize
    ts_cap = _pick_tile_rows(C, in_itemsize)

    rows = _cdiv(HW, _LANES)
    rows_per_chunk = _cdiv(rows, S)
    if rows_per_chunk <= ts_cap:
        if S == 1 and HW % _LANES == 0:
            ts = rows                   # single full-extent tile, no padding needed
        else:
            ts = _round_up(rows_per_chunk, 8)
        tiles_per_chunk = 1
    else:
        ts = ts_cap
        tiles_per_chunk = _cdiv(rows_per_chunk, ts)
    tile_px = ts * _LANES
    hw_pad = S * tiles_per_chunk * tile_px
    padded = hw_pad != HW

    # Reshapes are free; the pad (only when H*W is not tile-aligned) is one copy.
    logits = y_pred.reshape(N, C, HW)
    tgt = y_true.astype(jnp.int32).reshape(N, HW)
    wgt = weights.reshape(N, HW)
    if padded:
        pad = hw_pad - HW
        logits = jnp.pad(logits, ((0, 0), (0, 0), (0, pad)))
        tgt = jnp.pad(tgt, ((0, 0), (0, pad)))
        wgt = jnp.pad(wgt, ((0, 0), (0, pad)))
    logits = logits.reshape(N, C, hw_pad // _LANES, _LANES)
    tgt = tgt.reshape(N, hw_pad // _LANES, _LANES)
    wgt = wgt.reshape(N, hw_pad // _LANES, _LANES)

    def kernel(logits_ref, tgt_ref, w_ref, inter_ref, denom_ref, ce_ref,
               inter_acc, denom_acc, ce_acc):
        t = pl.program_id(2)

        @pl.when(t == 0)
        def _():
            inter_acc[...] = jnp.zeros_like(inter_acc)
            denom_acc[...] = jnp.zeros_like(denom_acc)
            ce_acc[...] = jnp.zeros_like(ce_acc)

        target = tgt_ref[...]                              # (ts, 128) int32
        w = w_ref[...].astype(jnp.float32)                 # (ts, 128)

        # Dense (ts, 128) class slabs: full sublane occupancy regardless of C.
        lg = [logits_ref[c].astype(jnp.float32) for c in range(C)]

        # Numerically stable softmax over the class axis (short unrolled loop).
        m = lg[0]
        for c in range(1, C):
            m = jnp.maximum(m, lg[c])
        ex = [jnp.exp(lg[c] - m) for c in range(C)]
        sum_ex = ex[0]
        for c in range(1, C):
            sum_ex = sum_ex + ex[c]
        inv = pl.reciprocal(sum_ex, approx=True)           # EUP slot
        inv = inv * (2.0 - sum_ex * inv)                   # one Newton step (~1e-7 rel)
        lse = jnp.log(sum_ex)

        if padded:
            s_idx = pl.program_id(1)
            tile_idx = s_idx * tiles_per_chunk + t
            base = tile_idx * tile_px
            sub = jax.lax.broadcasted_iota(jnp.int32, (ts, _LANES), 0)
            lane = jax.lax.broadcasted_iota(jnp.int32, (ts, _LANES), 1)
            valid = (base + sub * _LANES + lane) < HW
        else:
            valid = None

        logit_t = jnp.zeros((ts, _LANES), jnp.float32)
        for c in range(C):
            is_c = target == c
            soft = ex[c] * inv
            onehot = is_c.astype(jnp.float32)
            if valid is None:
                inter_acc[c] += jnp.where(is_c, soft, 0.0)
                denom_acc[c] += soft + onehot
            else:
                inter_acc[c] += jnp.where(jnp.logical_and(is_c, valid), soft, 0.0)
                denom_acc[c] += jnp.where(valid, soft + onehot, 0.0)
            logit_t = logit_t + jnp.where(is_c, lg[c], 0.0)

        # per-pixel CE = -(logit_t - m - lse); weighted by w (pad lanes carry w=0)
        ce_term = ((m + lse) - logit_t) * w
        if valid is not None:
            ce_term = jnp.where(valid, ce_term, 0.0)
        ce_acc[...] += ce_term

        # One sublane reduce per chunk at the last spatial tile; outputs stay
        # lane-dense (128 wide) so the writebacks are unmasked stores.
        @pl.when(t == pl.num_programs(2) - 1)
        def _():
            inter_ref[...] = jnp.sum(inter_acc[...], axis=1)
            denom_ref[...] = jnp.sum(denom_acc[...], axis=1)
            ce_ref[...] = jnp.sum(ce_acc[...], axis=0, keepdims=True)

    grid = (N, S, tiles_per_chunk)

    inter_out, denom_out, ce_out = pl.pallas_call(
        kernel,
        out_shape=(
            jax.ShapeDtypeStruct((N, S, C, _LANES), jnp.float32),
            jax.ShapeDtypeStruct((N, S, C, _LANES), jnp.float32),
            jax.ShapeDtypeStruct((N, S, 1, _LANES), jnp.float32),
        ),
        grid_spec=pltpu.PrefetchScalarGridSpec(
            num_scalar_prefetch=0,
            grid=grid,
            in_specs=[
                pl.BlockSpec((None, C, ts, _LANES),
                             lambda n, s, t: (n, 0, s * tiles_per_chunk + t, 0)),
                pl.BlockSpec((None, ts, _LANES),
                             lambda n, s, t: (n, s * tiles_per_chunk + t, 0)),
                pl.BlockSpec((None, ts, _LANES),
                             lambda n, s, t: (n, s * tiles_per_chunk + t, 0)),
            ],
            out_specs=[
                pl.BlockSpec((None, None, C, _LANES), lambda n, s, t: (n, s, 0, 0)),
                pl.BlockSpec((None, None, C, _LANES), lambda n, s, t: (n, s, 0, 0)),
                pl.BlockSpec((None, None, 1, _LANES), lambda n, s, t: (n, s, 0, 0)),
            ],
            scratch_shapes=[
                pltpu.VMEM((C, ts, _LANES), jnp.float32),
                pltpu.VMEM((C, ts, _LANES), jnp.float32),
                pltpu.VMEM((ts, _LANES), jnp.float32),
            ],
        ),
        compiler_params=pltpu.CompilerParams(
            dimension_semantics=("parallel", "parallel", "arbitrary"),
            vmem_limit_bytes=_VMEM_LIMIT_BYTES),
    )(logits, tgt, wgt)

    # Combine the tiny per-(batch, chunk) lane-wide partials in JAX.
    inter = jnp.sum(inter_out, axis=(0, 1, 3))               # (C,)
    denom = jnp.sum(denom_out, axis=(0, 1, 3))               # (C,)
    ce_sum = jnp.sum(ce_out)

    # Dice: mean over classes of 1 - 2*intersection / (denominator + eps)
    dice_per_channel = 1.0 - 2.0 * inter / (denom + EPS)
    dice_val = jnp.sum(dice_per_channel) / C

    # CE: mean over all N*H*W pixels of (per-pixel CE * weight)
    ce_val = ce_sum / (N * H * W)

    return weight_dice * dice_val + weight_ce * ce_val


def _reference_loss(y_pred, y_true, weights, weight_dice=1.0, weight_ce=1.0):
    """Pure-JAX reference mirroring the PyTorch module semantics."""
    N, C, H, W = y_pred.shape
    soft = jax.nn.softmax(y_pred, axis=1)
    onehot = jax.nn.one_hot(y_true, C, axis=1, dtype=soft.dtype)        # N,C,H,W
    numerator = 2.0 * jnp.sum(soft * onehot, axis=(0, 2, 3))
    denominator = jnp.sum(soft + onehot, axis=(0, 2, 3)) + EPS
    dice_val = jnp.sum(1.0 - numerator / denominator) / C
    logp = jax.nn.log_softmax(y_pred, axis=1)
    ce_pix = -jnp.take_along_axis(logp, y_true[:, None], axis=1)[:, 0]  # N,H,W
    ce_val = jnp.mean(ce_pix * weights)
    return weight_dice * dice_val + weight_ce * ce_val


if __name__ == "__main__":
    k1, k2, k3, k4, k5, k6 = jax.random.split(jax.random.PRNGKey(0), 6)

    # Case 1: small, tile-aligned spatial extent (typical module usage).
    N, C, H, W = 2, 4, 16, 16
    y_pred = jax.random.normal(k1, (N, C, H, W), dtype=jnp.float32)
    y_true = jax.random.randint(k2, (N, H, W), 0, C, dtype=jnp.int32)
    weights = jax.random.uniform(k3, (N, H, W), dtype=jnp.float32)
    weights_list = jnp.ones((C,), dtype=jnp.float32)   # unused by the forward pass

    out = jax.block_until_ready(combined_loss(y_pred, y_true, weights, weights_list))
    ref = _reference_loss(y_pred, y_true, weights)
    if not jnp.allclose(out, ref, rtol=1e-5, atol=1e-5):
        raise AssertionError(f"case1 mismatch: pallas={out} ref={ref}")

    # Case 2: odd batch + non-128-divisible H*W exercises the pad/mask path and
    # the spatial-chunk (megacore) grid axis.
    N, C, H, W = 3, 5, 10, 10
    y_pred = jax.random.normal(k4, (N, C, H, W), dtype=jnp.float32)
    y_true = jax.random.randint(k5, (N, H, W), 0, C, dtype=jnp.int32)
    weights = jax.random.uniform(k6, (N, H, W), dtype=jnp.float32)

    out = jax.block_until_ready(combined_loss(y_pred, y_true, weights))
    ref = _reference_loss(y_pred, y_true, weights)
    if not jnp.allclose(out, ref, rtol=1e-5, atol=1e-5):
        raise AssertionError(f"case2 mismatch: pallas={out} ref={ref}")

    print("KERNEL_OK")
</pallas_src>

<mosaic_0001>
module attributes {stable_mosaic.version = 11 : i64} {
  func.func @kernel(%arg0: i32, %arg1: i32, %arg2: i32, %arg3: memref<1x4x2x128xf32, #tpu.memory_space<vmem>>, %arg4: memref<1x2x128xi32, #tpu.memory_space<vmem>>, %arg5: memref<1x2x128xf32, #tpu.memory_space<vmem>>, %arg6: memref<1x1x4x128xf32, #tpu.memory_space<vmem>>, %arg7: memref<1x1x4x128xf32, #tpu.memory_space<vmem>>, %arg8: memref<1x1x1x128xf32, #tpu.memory_space<vmem>>, %arg9: memref<4x2x128xf32, #tpu.memory_space<vmem>>, %arg10: memref<4x2x128xf32, #tpu.memory_space<vmem>>, %arg11: memref<2x128xf32, #tpu.memory_space<vmem>>) attributes {dimension_semantics = [#tpu.dimension_semantics<parallel>, #tpu.dimension_semantics<parallel>, #tpu.dimension_semantics<arbitrary>], iteration_bounds = array<i64: 2, 1, 1>, scalar_prefetch = 0 : i64, scratch_operands = 3 : i64, tpu.core_type = #tpu.core_type<tc>, window_params = [{transform_indices = @transform_0, window_bounds = array<i64: 1, 4, 2, 128>}, {transform_indices = @transform_1, window_bounds = array<i64: 1, 2, 128>}, {transform_indices = @transform_2, window_bounds = array<i64: 1, 2, 128>}, {transform_indices = @transform_3, window_bounds = array<i64: 1, 1, 4, 128>}, {transform_indices = @transform_4, window_bounds = array<i64: 1, 1, 4, 128>}, {transform_indices = @transform_5, window_bounds = array<i64: 1, 1, 1, 128>}]} {
    %c0_i32 = arith.constant 0 : i32
    %0 = arith.cmpi eq, %arg2, %c0_i32 : i32
    %1 = arith.extui %0 : i1 to i32
    %c0_i32_0 = arith.constant 0 : i32
    %2 = arith.cmpi ne, %1, %c0_i32_0 : i32
    scf.if %2 {
      %cst_83 = arith.constant 0.000000e+00 : f32
      %137 = vector.broadcast %cst_83 : f32 to vector<4x2x128xf32>
      %c0_84 = arith.constant 0 : index
      %c0_85 = arith.constant 0 : index
      %c0_86 = arith.constant 0 : index
      %138 = vector.load %arg9[%c0_84, %c0_85, %c0_86] : memref<4x2x128xf32, #tpu.memory_space<vmem>>, vector<4x2x128xf32>
      tpu.vector_store %arg9[%c0_84, %c0_85, %c0_86], %137 {strides = array<i32>} : memref<4x2x128xf32, #tpu.memory_space<vmem>>, vector<4x2x128xf32>,
      %cst_87 = arith.constant 0.000000e+00 : f32
      %139 = vector.broadcast %cst_87 : f32 to vector<4x2x128xf32>
      %c0_88 = arith.constant 0 : index
      %c0_89 = arith.constant 0 : index
      %c0_90 = arith.constant 0 : index
      %140 = vector.load %arg10[%c0_88, %c0_89, %c0_90] : memref<4x2x128xf32, #tpu.memory_space<vmem>>, vector<4x2x128xf32>
      tpu.vector_store %arg10[%c0_88, %c0_89, %c0_90], %139 {strides = array<i32>} : memref<4x2x128xf32, #tpu.memory_space<vmem>>, vector<4x2x128xf32>,
      %cst_91 = arith.constant 0.000000e+00 : f32
      %141 = vector.broadcast %cst_91 : f32 to vector<2x128xf32>
      %c0_92 = arith.constant 0 : index
      %c0_93 = arith.constant 0 : index
      %142 = vector.load %arg11[%c0_92, %c0_93] : memref<2x128xf32, #tpu.memory_space<vmem>>, vector<2x128xf32>
      tpu.vector_store %arg11[%c0_92, %c0_93], %141 {strides = array<i32>} : memref<2x128xf32, #tpu.memory_space<vmem>>, vector<2x128xf32>,
    } else {
    }
    %c0 = arith.constant 0 : index
    %c0_1 = arith.constant 0 : index
    %c0_2 = arith.constant 0 : index
    %3 = vector.load %arg4[%c0, %c0_1, %c0_2] : memref<1x2x128xi32, #tpu.memory_space<vmem>>, vector<1x2x128xi32>
    %4 = vector.shape_cast %3 : vector<1x2x128xi32> to vector<2x128xi32>
    %c0_3 = arith.constant 0 : index
    %c0_4 = arith.constant 0 : index
    %c0_5 = arith.constant 0 : index
    %5 = vector.load %arg5[%c0_3, %c0_4, %c0_5] : memref<1x2x128xf32, #tpu.memory_space<vmem>>, vector<1x2x128xf32>
    %6 = vector.shape_cast %5 : vector<1x2x128xf32> to vector<2x128xf32>
    %c0_6 = arith.constant 0 : index
    %c0_7 = arith.constant 0 : index
    %c0_8 = arith.constant 0 : index
    %c0_9 = arith.constant 0 : index
    %7 = vector.load %arg3[%c0_6, %c0_7, %c0_8, %c0_9] : memref<1x4x2x128xf32, #tpu.memory_space<vmem>>, vector<1x1x2x128xf32>
    %8 = vector.shape_cast %7 : vector<1x1x2x128xf32> to vector<2x128xf32>
    %c0_10 = arith.constant 0 : index
    %c1 = arith.constant 1 : index
    %c0_11 = arith.constant 0 : index
    %c0_12 = arith.constant 0 : index
    %9 = vector.load %arg3[%c0_10, %c1, %c0_11, %c0_12] : memref<1x4x2x128xf32, #tpu.memory_space<vmem>>, vector<1x1x2x128xf32>
    %10 = vector.shape_cast %9 : vector<1x1x2x128xf32> to vector<2x128xf32>
    %c0_13 = arith.constant 0 : index
    %c2 = arith.constant 2 : index
    %c0_14 = arith.constant 0 : index
    %c0_15 = arith.constant 0 : index
    %11 = vector.load %arg3[%c0_13, %c2, %c0_14, %c0_15] : memref<1x4x2x128xf32, #tpu.memory_space<vmem>>, vector<1x1x2x128xf32>
    %12 = vector.shape_cast %11 : vector<1x1x2x128xf32> to vector<2x128xf32>
    %c0_16 = arith.constant 0 : index
    %c3 = arith.constant 3 : index
    %c0_17 = arith.constant 0 : index
    %c0_18 = arith.constant 0 : index
    %13 = vector.load %arg3[%c0_16, %c3, %c0_17, %c0_18] : memref<1x4x2x128xf32, #tpu.memory_space<vmem>>, vector<1x1x2x128xf32>
    %14 = vector.shape_cast %13 : vector<1x1x2x128xf32> to vector<2x128xf32>
    %15 = arith.maximumf %8, %10 : vector<2x128xf32>
    %16 = arith.maximumf %15, %12 : vector<2x128xf32>
    %17 = arith.maximumf %16, %14 : vector<2x128xf32>
    %18 = arith.subf %8, %17 : vector<2x128xf32>
    %19 = math.exp %18 : vector<2x128xf32>
    %20 = arith.subf %10, %17 : vector<2x128xf32>
    %21 = math.exp %20 : vector<2x128xf32>
    %22 = arith.subf %12, %17 : vector<2x128xf32>
    %23 = math.exp %22 : vector<2x128xf32>
    %24 = arith.subf %14, %17 : vector<2x128xf32>
    %25 = math.exp %24 : vector<2x128xf32>
    %26 = arith.addf %19, %21 : vector<2x128xf32>
    %27 = arith.addf %26, %23 : vector<2x128xf32>
    %28 = arith.addf %27, %25 : vector<2x128xf32>
    %29 = tpu.reciprocal %28 {approx = true} : vector<2x128xf32> -> vector<2x128xf32>
    %30 = arith.mulf %28, %29 : vector<2x128xf32>
    %cst = arith.constant 2.000000e+00 : f32
    %31 = vector.broadcast %cst : f32 to vector<2x128xf32>
    %32 = arith.subf %31, %30 : vector<2x128xf32>
    %33 = arith.mulf %29, %32 : vector<2x128xf32>
    %34 = math.log %28 : vector<2x128xf32>
    %cst_19 = arith.constant 0.000000e+00 : f32
    %35 = vector.broadcast %cst_19 : f32 to vector<2x128xf32>
    %c0_i32_20 = arith.constant 0 : i32
    %36 = vector.broadcast %c0_i32_20 : i32 to vector<2x128xi32>
    %37 = arith.cmpi eq, %4, %36 : vector<2x128xi32>
    %38 = arith.mulf %19, %33 : vector<2x128xf32>
    %39 = arith.extui %37 : vector<2x128xi1> to vector<2x128xi32>
    %40 = arith.sitofp %39 : vector<2x128xi32> to vector<2x128xf32>
    %c0_21 = arith.constant 0 : index
    %c0_22 = arith.constant 0 : index
    %c0_23 = arith.constant 0 : index
    %41 = vector.load %arg9[%c0_21, %c0_22, %c0_23] : memref<4x2x128xf32, #tpu.memory_space<vmem>>, vector<1x2x128xf32>
    %42 = vector.shape_cast %41 : vector<1x2x128xf32> to vector<2x128xf32>
    %cst_24 = arith.constant 0.000000e+00 : f32
    %43 = vector.broadcast %cst_24 : f32 to vector<2x128xf32>
    %44 = arith.select %37, %38, %43 : vector<2x128xi1>, vector<2x128xf32>
    %45 = arith.addf %42, %44 : vector<2x128xf32>
    %c0_25 = arith.constant 0 : index
    %c0_26 = arith.constant 0 : index
    %c0_27 = arith.constant 0 : index
    %46 = vector.load %arg9[%c0_25, %c0_26, %c0_27] : memref<4x2x128xf32, #tpu.memory_space<vmem>>, vector<1x2x128xf32>
    %47 = vector.shape_cast %46 : vector<1x2x128xf32> to vector<2x128xf32>
    %48 = vector.shape_cast %45 : vector<2x128xf32> to vector<1x2x128xf32>
    tpu.vector_store %arg9[%c0_25, %c0_26, %c0_27], %48 {strides = array<i32>} : memref<4x2x128xf32, #tpu.memory_space<vmem>>, vector<1x2x128xf32>,
    %c0_28 = arith.constant 0 : index
    %c0_29 = arith.constant 0 : index
    %c0_30 = arith.constant 0 : index
    %49 = vector.load %arg10[%c0_28, %c0_29, %c0_30] : memref<4x2x128xf32, #tpu.memory_space<vmem>>, vector<1x2x128xf32>
    %50 = vector.shape_cast %49 : vector<1x2x128xf32> to vector<2x128xf32>
    %51 = arith.addf %38, %40 : vector<2x128xf32>
    %52 = arith.addf %50, %51 : vector<2x128xf32>
    %c0_31 = arith.constant 0 : index
    %c0_32 = arith.constant 0 : index
    %c0_33 = arith.constant 0 : index
    %53 = vector.load %arg10[%c0_31, %c0_32, %c0_33] : memref<4x2x128xf32, #tpu.memory_space<vmem>>, vector<1x2x128xf32>
    %54 = vector.shape_cast %53 : vector<1x2x128xf32> to vector<2x128xf32>
    %55 = vector.shape_cast %52 : vector<2x128xf32> to vector<1x2x128xf32>
    tpu.vector_store %arg10[%c0_31, %c0_32, %c0_33], %55 {strides = array<i32>} : memref<4x2x128xf32, #tpu.memory_space<vmem>>, vector<1x2x128xf32>,
    %cst_34 = arith.constant 0.000000e+00 : f32
    %56 = vector.broadcast %cst_34 : f32 to vector<2x128xf32>
    %57 = arith.select %37, %8, %56 : vector<2x128xi1>, vector<2x128xf32>
    %58 = arith.addf %35, %57 : vector<2x128xf32>
    %c1_i32 = arith.constant 1 : i32
    %59 = vector.broadcast %c1_i32 : i32 to vector<2x128xi32>
    %60 = arith.cmpi eq, %4, %59 : vector<2x128xi32>
    %61 = arith.mulf %21, %33 : vector<2x128xf32>
    %62 = arith.extui %60 : vector<2x128xi1> to vector<2x128xi32>
    %63 = arith.sitofp %62 : vector<2x128xi32> to vector<2x128xf32>
    %c1_35 = arith.constant 1 : index
    %c0_36 = arith.constant 0 : index
    %c0_37 = arith.constant 0 : index
    %64 = vector.load %arg9[%c1_35, %c0_36, %c0_37] : memref<4x2x128xf32, #tpu.memory_space<vmem>>, vector<1x2x128xf32>
    %65 = vector.shape_cast %64 : vector<1x2x128xf32> to vector<2x128xf32>
    %cst_38 = arith.constant 0.000000e+00 : f32
    %66 = vector.broadcast %cst_38 : f32 to vector<2x128xf32>
    %67 = arith.select %60, %61, %66 : vector<2x128xi1>, vector<2x128xf32>
    %68 = arith.addf %65, %67 : vector<2x128xf32>
    %c1_39 = arith.constant 1 : index
    %c0_40 = arith.constant 0 : index
    %c0_41 = arith.constant 0 : index
    %69 = vector.load %arg9[%c1_39, %c0_40, %c0_41] : memref<4x2x128xf32, #tpu.memory_space<vmem>>, vector<1x2x128xf32>
    %70 = vector.shape_cast %69 : vector<1x2x128xf32> to vector<2x128xf32>
    %71 = vector.shape_cast %68 : vector<2x128xf32> to vector<1x2x128xf32>
    tpu.vector_store %arg9[%c1_39, %c0_40, %c0_41], %71 {strides = array<i32>} : memref<4x2x128xf32, #tpu.memory_space<vmem>>, vector<1x2x128xf32>,
    %c1_42 = arith.constant 1 : index
    %c0_43 = arith.constant 0 : index
    %c0_44 = arith.constant 0 : index
    %72 = vector.load %arg10[%c1_42, %c0_43, %c0_44] : memref<4x2x128xf32, #tpu.memory_space<vmem>>, vector<1x2x128xf32>
    %73 = vector.shape_cast %72 : vector<1x2x128xf32> to vector<2x128xf32>
    %74 = arith.addf %61, %63 : vector<2x128xf32>
    %75 = arith.addf %73, %74 : vector<2x128xf32>
    %c1_45 = arith.constant 1 : index
    %c0_46 = arith.constant 0 : index
    %c0_47 = arith.constant 0 : index
    %76 = vector.load %arg10[%c1_45, %c0_46, %c0_47] : memref<4x2x128xf32, #tpu.memory_space<vmem>>, vector<1x2x128xf32>
    %77 = vector.shape_cast %76 : vector<1x2x128xf32> to vector<2x128xf32>
    %78 = vector.shape_cast %75 : vector<2x128xf32> to vector<1x2x128xf32>
    tpu.vector_store %arg10[%c1_45, %c0_46, %c0_47], %78 {strides = array<i32>} : memref<4x2x128xf32, #tpu.memory_space<vmem>>, vector<1x2x128xf32>,
    %cst_48 = arith.constant 0.000000e+00 : f32
    %79 = vector.broadcast %cst_48 : f32 to vector<2x128xf32>
    %80 = arith.select %60, %10, %79 : vector<2x128xi1>, vector<2x128xf32>
    %81 = arith.addf %58, %80 : vector<2x128xf32>
    %c2_i32 = arith.constant 2 : i32
    %82 = vector.broadcast %c2_i32 : i32 to vector<2x128xi32>
    %83 = arith.cmpi eq, %4, %82 : vector<2x128xi32>
    %84 = arith.mulf %23, %33 : vector<2x128xf32>
    %85 = arith.extui %83 : vector<2x128xi1> to vector<2x128xi32>
    %86 = arith.sitofp %85 : vector<2x128xi32> to vector<2x128xf32>
    %c2_49 = arith.constant 2 : index
    %c0_50 = arith.constant 0 : index
    %c0_51 = arith.constant 0 : index
    %87 = vector.load %arg9[%c2_49, %c0_50, %c0_51] : memref<4x2x128xf32, #tpu.memory_space<vmem>>, vector<1x2x128xf32>
    %88 = vector.shape_cast %87 : vector<1x2x128xf32> to vector<2x128xf32>
    %cst_52 = arith.constant 0.000000e+00 : f32
    %89 = vector.broadcast %cst_52 : f32 to vector<2x128xf32>
    %90 = arith.select %83, %84, %89 : vector<2x128xi1>, vector<2x128xf32>
    %91 = arith.addf %88, %90 : vector<2x128xf32>
    %c2_53 = arith.constant 2 : index
    %c0_54 = arith.constant 0 : index
    %c0_55 = arith.constant 0 : index
    %92 = vector.load %arg9[%c2_53, %c0_54, %c0_55] : memref<4x2x128xf32, #tpu.memory_space<vmem>>, vector<1x2x128xf32>
    %93 = vector.shape_cast %92 : vector<1x2x128xf32> to vector<2x128xf32>
    %94 = vector.shape_cast %91 : vector<2x128xf32> to vector<1x2x128xf32>
    tpu.vector_store %arg9[%c2_53, %c0_54, %c0_55], %94 {strides = array<i32>} : memref<4x2x128xf32, #tpu.memory_space<vmem>>, vector<1x2x128xf32>,
    %c2_56 = arith.constant 2 : index
    %c0_57 = arith.constant 0 : index
    %c0_58 = arith.constant 0 : index
    %95 = vector.load %arg10[%c2_56, %c0_57, %c0_58] : memref<4x2x128xf32, #tpu.memory_space<vmem>>, vector<1x2x128xf32>
    %96 = vector.shape_cast %95 : vector<1x2x128xf32> to vector<2x128xf32>
    %97 = arith.addf %84, %86 : vector<2x128xf32>
    %98 = arith.addf %96, %97 : vector<2x128xf32>
    %c2_59 = arith.constant 2 : index
    %c0_60 = arith.constant 0 : index
    %c0_61 = arith.constant 0 : index
    %99 = vector.load %arg10[%c2_59, %c0_60, %c0_61] : memref<4x2x128xf32, #tpu.memory_space<vmem>>, vector<1x2x128xf32>
    %100 = vector.shape_cast %99 : vector<1x2x128xf32> to vector<2x128xf32>
    %101 = vector.shape_cast %98 : vector<2x128xf32> to vector<1x2x128xf32>
    tpu.vector_store %arg10[%c2_59, %c0_60, %c0_61], %101 {strides = array<i32>} : memref<4x2x128xf32, #tpu.memory_space<vmem>>, vector<1x2x128xf32>,
    %cst_62 = arith.constant 0.000000e+00 : f32
    %102 = vector.broadcast %cst_62 : f32 to vector<2x128xf32>
    %103 = arith.select %83, %12, %102 : vector<2x128xi1>, vector<2x128xf32>
    %104 = arith.addf %81, %103 : vector<2x128xf32>
    %c3_i32 = arith.constant 3 : i32
    %105 = vector.broadcast %c3_i32 : i32 to vector<2x128xi32>
    %106 = arith.cmpi eq, %4, %105 : vector<2x128xi32>
    %107 = arith.mulf %25, %33 : vector<2x128xf32>
    %108 = arith.extui %106 : vector<2x128xi1> to vector<2x128xi32>
    %109 = arith.sitofp %108 : vector<2x128xi32> to vector<2x128xf32>
    %c3_63 = arith.constant 3 : index
    %c0_64 = arith.constant 0 : index
    %c0_65 = arith.constant 0 : index
    %110 = vector.load %arg9[%c3_63, %c0_64, %c0_65] : memref<4x2x128xf32, #tpu.memory_space<vmem>>, vector<1x2x128xf32>
    %111 = vector.shape_cast %110 : vector<1x2x128xf32> to vector<2x128xf32>
    %cst_66 = arith.constant 0.000000e+00 : f32
    %112 = vector.broadcast %cst_66 : f32 to vector<2x128xf32>
    %113 = arith.select %106, %107, %112 : vector<2x128xi1>, vector<2x128xf32>
    %114 = arith.addf %111, %113 : vector<2x128xf32>
    %c3_67 = arith.constant 3 : index
    %c0_68 = arith.constant 0 : index
    %c0_69 = arith.constant 0 : index
    %115 = vector.load %arg9[%c3_67, %c0_68, %c0_69] : memref<4x2x128xf32, #tpu.memory_space<vmem>>, vector<1x2x128xf32>
    %116 = vector.shape_cast %115 : vector<1x2x128xf32> to vector<2x128xf32>
    %117 = vector.shape_cast %114 : vector<2x128xf32> to vector<1x2x128xf32>
    tpu.vector_store %arg9[%c3_67, %c0_68, %c0_69], %117 {strides = array<i32>} : memref<4x2x128xf32, #tpu.memory_space<vmem>>, vector<1x2x128xf32>,
    %c3_70 = arith.constant 3 : index
    %c0_71 = arith.constant 0 : index
    %c0_72 = arith.constant 0 : index
    %118 = vector.load %arg10[%c3_70, %c0_71, %c0_72] : memref<4x2x128xf32, #tpu.memory_space<vmem>>, vector<1x2x128xf32>
    %119 = vector.shape_cast %118 : vector<1x2x128xf32> to vector<2x128xf32>
    %120 = arith.addf %107, %109 : vector<2x128xf32>
    %121 = arith.addf %119, %120 : vector<2x128xf32>
    %c3_73 = arith.constant 3 : index
    %c0_74 = arith.constant 0 : index
    %c0_75 = arith.constant 0 : index
    %122 = vector.load %arg10[%c3_73, %c0_74, %c0_75] : memref<4x2x128xf32, #tpu.memory_space<vmem>>, vector<1x2x128xf32>
    %123 = vector.shape_cast %122 : vector<1x2x128xf32> to vector<2x128xf32>
    %124 = vector.shape_cast %121 : vector<2x128xf32> to vector<1x2x128xf32>
    tpu.vector_store %arg10[%c3_73, %c0_74, %c0_75], %124 {strides = array<i32>} : memref<4x2x128xf32, #tpu.memory_space<vmem>>, vector<1x2x128xf32>,
    %cst_76 = arith.constant 0.000000e+00 : f32
    %125 = vector.broadcast %cst_76 : f32 to vector<2x128xf32>
    %126 = arith.select %106, %14, %125 : vector<2x128xi1>, vector<2x128xf32>
    %127 = arith.addf %104, %126 : vector<2x128xf32>
    %128 = arith.addf %17, %34 : vector<2x128xf32>
    %129 = arith.subf %128, %127 : vector<2x128xf32>
    %130 = arith.mulf %129, %6 : vector<2x128xf32>
    %c0_77 = arith.constant 0 : index
    %c0_78 = arith.constant 0 : index
    %131 = vector.load %arg11[%c0_77, %c0_78] : memref<2x128xf32, #tpu.memory_space<vmem>>, vector<2x128xf32>
    %132 = arith.addf %131, %130 : vector<2x128xf32>
    %c0_79 = arith.constant 0 : index
    %c0_80 = arith.constant 0 : index
    %133 = vector.load %arg11[%c0_79, %c0_80] : memref<2x128xf32, #tpu.memory_space<vmem>>, vector<2x128xf32>
    tpu.vector_store %arg11[%c0_79, %c0_80], %132 {strides = array<i32>} : memref<2x128xf32, #tpu.memory_space<vmem>>, vector<2x128xf32>,
    %c0_i32_81 = arith.constant 0 : i32
    %134 = arith.cmpi eq, %arg2, %c0_i32_81 : i32
    %135 = arith.extui %134 : i1 to i32
    %c0_i32_82 = arith.constant 0 : i32
    %136 = arith.cmpi ne, %135, %c0_i32_82 : i32
    scf.if %136 {
      %c0_83 = arith.constant 0 : index
      %c0_84 = arith.constant 0 : index
      %c0_85 = arith.constant 0 : index
      %137 = vector.load %arg9[%c0_83, %c0_84, %c0_85] : memref<4x2x128xf32, #tpu.memory_space<vmem>>, vector<4x2x128xf32>
      %cst_86 = arith.constant dense<0.000000e+00> : vector<4x128xf32>
      %138 = vector.multi_reduction <add>, %137, %cst_86 [1] : vector<4x2x128xf32> to vector<4x128xf32>
      %c0_87 = arith.constant 0 : index
      %c0_88 = arith.constant 0 : index
      %c0_89 = arith.constant 0 : index
      %c0_90 = arith.constant 0 : index
      %139 = vector.load %arg6[%c0_87, %c0_88, %c0_89, %c0_90] : memref<1x1x4x128xf32, #tpu.memory_space<vmem>>, vector<1x1x4x128xf32>
      %140 = vector.shape_cast %139 : vector<1x1x4x128xf32> to vector<4x128xf32>
      %141 = vector.shape_cast %138 : vector<4x128xf32> to vector<1x1x4x128xf32>
      tpu.vector_store %arg6[%c0_87, %c0_88, %c0_89, %c0_90], %141 {strides = array<i32>} : memref<1x1x4x128xf32, #tpu.memory_space<vmem>>, vector<1x1x4x128xf32>,
      %c0_91 = arith.constant 0 : index
      %c0_92 = arith.constant 0 : index
      %c0_93 = arith.constant 0 : index
      %142 = vector.load %arg10[%c0_91, %c0_92, %c0_93] : memref<4x2x128xf32, #tpu.memory_space<vmem>>, vector<4x2x128xf32>
      %cst_94 = arith.constant dense<0.000000e+00> : vector<4x128xf32>
      %143 = vector.multi_reduction <add>, %142, %cst_94 [1] : vector<4x2x128xf32> to vector<4x128xf32>
      %c0_95 = arith.constant 0 : index
      %c0_96 = arith.constant 0 : index
      %c0_97 = arith.constant 0 : index
      %c0_98 = arith.constant 0 : index
      %144 = vector.load %arg7[%c0_95, %c0_96, %c0_97, %c0_98] : memref<1x1x4x128xf32, #tpu.memory_space<vmem>>, vector<1x1x4x128xf32>
      %145 = vector.shape_cast %144 : vector<1x1x4x128xf32> to vector<4x128xf32>
      %146 = vector.shape_cast %143 : vector<4x128xf32> to vector<1x1x4x128xf32>
      tpu.vector_store %arg7[%c0_95, %c0_96, %c0_97, %c0_98], %146 {strides = array<i32>} : memref<1x1x4x128xf32, #tpu.memory_space<vmem>>, vector<1x1x4x128xf32>,
      %c0_99 = arith.constant 0 : index
      %c0_100 = arith.constant 0 : index
      %147 = vector.load %arg11[%c0_99, %c0_100] : memref<2x128xf32, #tpu.memory_space<vmem>>, vector<2x128xf32>
      %cst_101 = arith.constant dense<0.000000e+00> : vector<128xf32>
      %148 = vector.multi_reduction <add>, %147, %cst_101 [0] : vector<2x128xf32> to vector<128xf32>
      %149 = vector.shape_cast %148 : vector<128xf32> to vector<1x128xf32>
      %c0_102 = arith.constant 0 : index
      %c0_103 = arith.constant 0 : index
      %c0_104 = arith.constant 0 : index
      %c0_105 = arith.constant 0 : index
      %150 = vector.load %arg8[%c0_102, %c0_103, %c0_104, %c0_105] : memref<1x1x1x128xf32, #tpu.memory_space<vmem>>, vector<1x1x1x128xf32>
      %151 = vector.shape_cast %150 : vector<1x1x1x128xf32> to vector<1x128xf32>
      %152 = vector.shape_cast %149 : vector<1x128xf32> to vector<1x1x1x128xf32>
      tpu.vector_store %arg8[%c0_102, %c0_103, %c0_104, %c0_105], %152 {strides = array<i32>} : memref<1x1x1x128xf32, #tpu.memory_space<vmem>>, vector<1x1x1x128xf32>,
    } else {
    }
    return
  }
  func.func @transform_0(%arg0: i32, %arg1: i32, %arg2: i32) -> (i32, i32, i32, i32) {
    %c1_i32 = arith.constant 1 : i32
    %0 = arith.muli %arg1, %c1_i32 : i32
    %1 = arith.addi %0, %arg2 : i32
    %c0_i32 = arith.constant 0 : i32
    %c0_i32_0 = arith.constant 0 : i32
    %c0_i32_1 = arith.constant 0 : i32
    return %arg0, %c0_i32, %1, %c0_i32_0 : i32, i32, i32, i32
  }
  func.func @transform_1(%arg0: i32, %arg1: i32, %arg2: i32) -> (i32, i32, i32) {
    %c1_i32 = arith.constant 1 : i32
    %0 = arith.muli %arg1, %c1_i32 : i32
    %1 = arith.addi %0, %arg2 : i32
    %c0_i32 = arith.constant 0 : i32
    %c0_i32_0 = arith.constant 0 : i32
    return %arg0, %1, %c0_i32 : i32, i32, i32
  }
  func.func @transform_2(%arg0: i32, %arg1: i32, %arg2: i32) -> (i32, i32, i32) {
    %c1_i32 = arith.constant 1 : i32
    %0 = arith.muli %arg1, %c1_i32 : i32
    %1 = arith.addi %0, %arg2 : i32
    %c0_i32 = arith.constant 0 : i32
    %c0_i32_0 = arith.constant 0 : i32
    return %arg0, %1, %c0_i32 : i32, i32, i32
  }
  func.func @transform_3(%arg0: i32, %arg1: i32, %arg2: i32) -> (i32, i32, i32, i32) {
    %c0_i32 = arith.constant 0 : i32
    %c0_i32_0 = arith.constant 0 : i32
    %c0_i32_1 = arith.constant 0 : i32
    return %arg0, %arg1, %c0_i32, %c0_i32_0 : i32, i32, i32, i32
  }
  func.func @transform_4(%arg0: i32, %arg1: i32, %arg2: i32) -> (i32, i32, i32, i32) {
    %c0_i32 = arith.constant 0 : i32
    %c0_i32_0 = arith.constant 0 : i32
    %c0_i32_1 = arith.constant 0 : i32
    return %arg0, %arg1, %c0_i32, %c0_i32_0 : i32, i32, i32, i32
  }
  func.func @transform_5(%arg0: i32, %arg1: i32, %arg2: i32) -> (i32, i32, i32, i32) {
    %c0_i32 = arith.constant 0 : i32
    %c0_i32_0 = arith.constant 0 : i32
    %c0_i32_1 = arith.constant 0 : i32
    return %arg0, %arg1, %c0_i32, %c0_i32_0 : i32, i32, i32, i32
  }
}

</mosaic_0001>

<llo_original>
// kernel: tpu_custom_call.1
$region0: #{tpu_custom_call.1}
  #allocation0 [shape = 'u32[]', space=smem, size = 0x4, offset = 0x4, fixed_abs, tag = 'smem constant byte address 0x4 - core index']
  #allocation1 [shape = 'u32[72,128]{1,0:T(1,128)}', space=vmem, size = 0x9000, scoped, tag = 'internal scratch']
  #allocation2 [shape = 'f32[4,2,128]{2,1,0:T(2,128)}', space=vmem, size = 0x1000, scoped, tag = 'scratch operand']
  #allocation3 [shape = 'f32[4,2,128]{2,1,0:T(2,128)}', space=vmem, size = 0x1000, scoped, tag = 'scratch operand']
  #allocation4 [shape = 'f32[2,128]{1,0:T(2,128)}', space=vmem, size = 0x400, scoped, tag = 'scratch operand']
  %s0 = inlined_call_operand.hbm [shape: f32[2,4,2,128], index: 0, kind: input, shape index: {}]
  %s1 = inlined_call_operand.hbm [shape: s32[2,2,128], index: 1, kind: input, shape index: {}]
  %s2 = inlined_call_operand.hbm [shape: f32[2,2,128], index: 2, kind: input, shape index: {}]
  %s3 = inlined_call_operand.hbm [shape: f32[2,1,4,128], index: 3, kind: output, shape index: {0}]
  %s4 = inlined_call_operand.hbm [shape: f32[2,1,4,128], index: 4, kind: output, shape index: {1}]
  %s5 = inlined_call_operand.hbm [shape: f32[2,1,1,128], index: 5, kind: output, shape index: {2}]
  %6 = xla_tuple %s3, %s4, %s5
  %s7 = sld [smem:[#allocation0]]
  $region81: #{tpu_custom_call.1} parent=0
    _
  %s9 = ssub.s32 1, %s7
  %s10 = scalar_select 0, %s9, %s7
  $region1: #{tpu_custom_call.1} parent=0
    #allocation5 [shape = 'u8[8192]{0}', space=vmem, size = 0x2000, scoped, tag = 'input window, operand 0']
    #allocation6 [shape = 's32[2]{0}', space=sflag, size = 0x8, scoped, tag = 'scoped memory for tpu_custom_call.1']
    #allocation7 [shape = 's32[2]{0}', space=sflag, size = 0x8, scoped, tag = 'scoped memory for tpu_custom_call.1']
    #allocation8 [shape = 'u8[2048]{0}', space=vmem, size = 0x800, scoped, tag = 'input window, operand 1']
    #allocation9 [shape = 's32[2]{0}', space=sflag, size = 0x8, scoped, tag = 'scoped memory for tpu_custom_call.1']
    #allocation10 [shape = 'u8[2048]{0}', space=vmem, size = 0x800, scoped, tag = 'input window, operand 2']
    #allocation11 [shape = 'u8[4096]{0}', space=vmem, size = 0x1000, scoped, tag = 'output window, operand 0']
    #allocation12 [shape = 'u8[4096]{0}', space=vmem, size = 0x1000, scoped, tag = 'output window, operand 1']
    #allocation13 [shape = 's32[2]{0}', space=sflag, size = 0x8, scoped, tag = 'scoped memory for tpu_custom_call.1']
    #allocation14 [shape = 'u8[1024]{0}', space=vmem, size = 0x400, scoped, tag = 'output window, operand 2']
    %11 = vsyncpa [#allocation6], 0
    %s12 = scalar_lea.sflag [#allocation6], 1
    %13 = vsyncpa %s12, 0
    %14 = vsyncpa [#allocation9], 0
    %s15 = scalar_lea.sflag [#allocation9], 1
    %16 = vsyncpa %s15, 0
    %17 = vsyncpa [#allocation7], 0
    %s18 = scalar_lea.sflag [#allocation7], 1
    %19 = vsyncpa %s18, 0
    %20 = vsyncpa [#allocation13], 0
    %s21 = scalar_lea.sflag [#allocation13], 1
    %22 = vsyncpa %s21, 0
    loop: start=0, step=1, limit=4
    $region2: #{tpu_custom_call.1} parent=1 // loop_pre_header
      _
    $region3: #{tpu_custom_call.1} parent=1 // loop_header
      %s24 = sphi 0, %s28
      %p25 = scmp.ge.s32.totalorder %s24, 4
      %s31 = sphi 0, %s50
      %s32 = sphi 0, %s46
      %s33 = sphi 0, %s42
      %s34 = sphi 0, %s31
      %s35 = sphi 0, %s32
      %s36 = sphi 0, %s33
      %s37 = sphi 0, %s34
      %s38 = sphi 0, %s35
      %s39 = sphi 0, %s36
      %s57 = sphi 0, %s59
      %s60 = sphi 0, %s57
      %s61 = sphi 0, %s60
      %s77 = sphi 0, %s61
      %s87 = sphi 0, %s89
      %s90 = sphi 0, %s87
      %s91 = sphi 0, %s90
      %s107 = sphi 0, %s91
      %s117 = sphi 0, %s119
      %s120 = sphi 0, %s117
      %s121 = sphi 0, %s120
      %s137 = sphi 0, %s121
      %s145 = sphi 0, %s147
      %s148 = sphi 0, %s145
      %s149 = sphi 0, %s148
      %s165 = sphi 0, %s149
      %s173 = sphi 0, %s175
      %s176 = sphi 0, %s173
      %s177 = sphi 0, %s176
      %s193 = sphi 0, %s177
      %s201 = sphi 0, %s203
      %s204 = sphi 0, %s201
      %s205 = sphi 0, %s204
      %s221 = sphi 0, %s205
    $region4: #{tpu_custom_call.1} parent=1 // loop_header_branch
      %27 = sbr.rel (%p25) target = $region8
    $region5: #{tpu_custom_call.1} parent=1 // loop_body
      %s29 = ssub.s32 %s24, 1
      %s30 = ssub.s32 %s24, 2
      %s40 = sadd.s32 1, %s33
      %p41 = scmp.ge.s32.totalorder %s40, 1
      %s42 = scalar_select %p41, 0, %s40
      %s43 = sadd.s32 1, %s32
      %s44 = scalar_select %p41, %s43, %s32
      %p45 = scmp.ge.s32.totalorder %s44, 1
      %s46 = scalar_select %p45, 0, %s44
      %s47 = sadd.s32 1, %s31
      %s48 = scalar_select %p45, %s47, %s31
      %p49 = scmp.ge.s32.totalorder %s48, 2
      %s50 = scalar_select %p49, 0, %s48
      %s51 = sadd.s32 %s32, %s33
      %s52 = sadd.s32 %s46, %s42
      %s53 = ssub.s32 %s31, %s50
      %s54 = ssub.s32 %s51, %s52
      %s55 = sor.u32 %s53, %s54
      %p56 = scmp.eq.s32.totalorder %s55, 0
      %s58 = sadd.s32 %s57, 1
      %s59 = scalar_select %p56, %s57, %s58
      %p62 = pneg %p56
      %p63 = scmp.eq.s32.totalorder %s24, 1
      %p64 = por %p62, %p63
      %p65 = scmp.ne.s32.totalorder %s57, %s60
      %p66 = scmp.eq.s32.totalorder %s24, 0
      %p67 = por %p65, %p66
      %p68 = scmp.ne.s32.totalorder %s57, %s60
      %p69 = scmp.eq.s32.totalorder %s29, 1
      %p70 = por %p68, %p69
      %p71 = scmp.ne.s32.totalorder %s60, %s61
      %p72 = scmp.eq.s32.totalorder %s29, 0
      %p73 = por %p71, %p72
      %p74 = scmp.ne.s32.totalorder %s60, %s61
      %p75 = scmp.eq.s32.totalorder %s30, 1
      %p76 = por %p74, %p75
      %p78 = scmp.ne.s32.totalorder %s61, %s77
      %p79 = scmp.eq.s32.totalorder %s30, 0
      %p80 = por %p78, %p79
      %s81 = sadd.s32 %s32, %s33
      %s82 = sadd.s32 %s46, %s42
      %s83 = ssub.s32 %s31, %s50
      %s84 = ssub.s32 %s81, %s82
      %s85 = sor.u32 %s83, %s84
      %p86 = scmp.eq.s32.totalorder %s85, 0
      %s88 = sadd.s32 %s87, 1
      %s89 = scalar_select %p86, %s87, %s88
      %p92 = pneg %p86
      %p93 = scmp.eq.s32.totalorder %s24, 1
      %p94 = por %p92, %p93
      %p95 = scmp.ne.s32.totalorder %s87, %s90
      %p96 = scmp.eq.s32.totalorder %s24, 0
      %p97 = por %p95, %p96
      %p98 = scmp.ne.s32.totalorder %s87, %s90
      %p99 = scmp.eq.s32.totalorder %s29, 1
      %p100 = por %p98, %p99
      %p101 = scmp.ne.s32.totalorder %s90, %s91
      %p102 = scmp.eq.s32.totalorder %s29, 0
      %p103 = por %p101, %p102
      %p104 = scmp.ne.s32.totalorder %s90, %s91
      %p105 = scmp.eq.s32.totalorder %s30, 1
      %p106 = por %p104, %p105
      %p108 = scmp.ne.s32.totalorder %s91, %s107
      %p109 = scmp.eq.s32.totalorder %s30, 0
      %p110 = por %p108, %p109
      %s111 = sadd.s32 %s32, %s33
      %s112 = sadd.s32 %s46, %s42
      %s113 = ssub.s32 %s31, %s50
      %s114 = ssub.s32 %s111, %s112
      %s115 = sor.u32 %s113, %s114
      %p116 = scmp.eq.s32.totalorder %s115, 0
      %s118 = sadd.s32 %s117, 1
      %s119 = scalar_select %p116, %s117, %s118
      %p122 = pneg %p116
      %p123 = scmp.eq.s32.totalorder %s24, 1
      %p124 = por %p122, %p123
      %p125 = scmp.ne.s32.totalorder %s117, %s120
      %p126 = scmp.eq.s32.totalorder %s24, 0
      %p127 = por %p125, %p126
      %p128 = scmp.ne.s32.totalorder %s117, %s120
      %p129 = scmp.eq.s32.totalorder %s29, 1
      %p130 = por %p128, %p129
      %p131 = scmp.ne.s32.totalorder %s120, %s121
      %p132 = scmp.eq.s32.totalorder %s29, 0
      %p133 = por %p131, %p132
      %p134 = scmp.ne.s32.totalorder %s120, %s121
      %p135 = scmp.eq.s32.totalorder %s30, 1
      %p136 = por %p134, %p135
      %p138 = scmp.ne.s32.totalorder %s121, %s137
      %p139 = scmp.eq.s32.totalorder %s30, 0
      %p140 = por %p138, %p139
      %s141 = ssub.s32 %s31, %s50
      %s142 = ssub.s32 %s32, %s46
      %s143 = sor.u32 %s141, %s142
      %p144 = scmp.eq.s32.totalorder %s143, 0
      %s146 = sadd.s32 %s145, 1
      %s147 = scalar_select %p144, %s145, %s146
      %p150 = pneg %p144
      %p151 = scmp.eq.s32.totalorder %s24, 1
      %p152 = por %p150, %p151
      %p153 = scmp.ne.s32.totalorder %s145, %s148
      %p154 = scmp.eq.s32.totalorder %s24, 0
      %p155 = por %p153, %p154
      %p156 = scmp.ne.s32.totalorder %s145, %s148
      %p157 = scmp.eq.s32.totalorder %s29, 1
      %p158 = por %p156, %p157
      %p159 = scmp.ne.s32.totalorder %s148, %s149
      %p160 = scmp.eq.s32.totalorder %s29, 0
      %p161 = por %p159, %p160
      %p162 = scmp.ne.s32.totalorder %s148, %s149
      %p163 = scmp.eq.s32.totalorder %s30, 1
      %p164 = por %p162, %p163
      %p166 = scmp.ne.s32.totalorder %s149, %s165
      %p167 = scmp.eq.s32.totalorder %s30, 0
      %p168 = por %p166, %p167
      %s169 = ssub.s32 %s31, %s50
      %s170 = ssub.s32 %s32, %s46
      %s171 = sor.u32 %s169, %s170
      %p172 = scmp.eq.s32.totalorder %s171, 0
      %s174 = sadd.s32 %s173, 1
      %s175 = scalar_select %p172, %s173, %s174
      %p178 = pneg %p172
      %p179 = scmp.eq.s32.totalorder %s24, 1
      %p180 = por %p178, %p179
      %p181 = scmp.ne.s32.totalorder %s173, %s176
      %p182 = scmp.eq.s32.totalorder %s24, 0
      %p183 = por %p181, %p182
      %p184 = scmp.ne.s32.totalorder %s173, %s176
      %p185 = scmp.eq.s32.totalorder %s29, 1
      %p186 = por %p184, %p185
      %p187 = scmp.ne.s32.totalorder %s176, %s177
      %p188 = scmp.eq.s32.totalorder %s29, 0
      %p189 = por %p187, %p188
      %p190 = scmp.ne.s32.totalorder %s176, %s177
      %p191 = scmp.eq.s32.totalorder %s30, 1
      %p192 = por %p190, %p191
      %p194 = scmp.ne.s32.totalorder %s177, %s193
      %p195 = scmp.eq.s32.totalorder %s30, 0
      %p196 = por %p194, %p195
      %s197 = ssub.s32 %s31, %s50
      %s198 = ssub.s32 %s32, %s46
      %s199 = sor.u32 %s197, %s198
      %p200 = scmp.eq.s32.totalorder %s199, 0
      %s202 = sadd.s32 %s201, 1
      %s203 = scalar_select %p200, %s201, %s202
      %p206 = pneg %p200
      %p207 = scmp.eq.s32.totalorder %s24, 1
      %p208 = por %p206, %p207
      %p209 = scmp.ne.s32.totalorder %s201, %s204
      %p210 = scmp.eq.s32.totalorder %s24, 0
      %p211 = por %p209, %p210
      %p212 = scmp.ne.s32.totalorder %s201, %s204
      %p213 = scmp.eq.s32.totalorder %s29, 1
      %p214 = por %p212, %p213
      %p215 = scmp.ne.s32.totalorder %s204, %s205
      %p216 = scmp.eq.s32.totalorder %s29, 0
      %p217 = por %p215, %p216
      %p218 = scmp.ne.s32.totalorder %s204, %s205
      %p219 = scmp.eq.s32.totalorder %s30, 1
      %p220 = por %p218, %p219
      %p222 = scmp.ne.s32.totalorder %s205, %s221
      %p223 = scmp.eq.s32.totalorder %s30, 0
      %p224 = por %p222, %p223
      %p225 = scmp.le.s32.totalorder 1, %s24
      %p226 = scmp.lt.s32.totalorder %s24, 3
      %p227 = pnand %p225, %p226
      %p228 = pneg %p227
      // Predicated region
      $region9: #{tpu_custom_call.1} parent=5 // pred_check
        _
      $region10: #{tpu_custom_call.1} parent=5 // pred_check_branch
        %230 = sbr.rel (%p227) target = $region12
      $region11: #{tpu_custom_call.1} parent=5 // pred_region
        %s231 = ssub.s32 %s24, 1
      $region12: #{tpu_custom_call.1} parent=5 // pred_fallthru
        _
      %p232 = scmp.lt.s32.totalorder %s24, 2
      // Predicated region
      $region13: #{tpu_custom_call.1} parent=5 // pred_check
        %p233 = pneg %p232
      $region14: #{tpu_custom_call.1} parent=5 // pred_check_branch
        %235 = sbr.rel (%p233) target = $region16
      $region15: #{tpu_custom_call.1} parent=5 // pred_region
        // Predicated region
        $region17: #{tpu_custom_call.1} parent=15 // pred_check
          %p236 = pneg %p67
        $region18: #{tpu_custom_call.1} parent=15 // pred_check_branch
          %238 = sbr.rel (%p236) target = $region20
        $region19: #{tpu_custom_call.1} parent=15 // pred_region
          %s239 = sand.u32 %s57, 1
          %s240 = scalar_lea.sflag [#allocation6], %s239
          %s241 = sand.u32 %s57, 1
          %s242 = smul.addr %s241, 8
          %s243 = scalar_lea.vmem [#allocation5], %s242
          %s244 = sadd.s32 %s32, %s33
          %246 = vsyncadd %s240, 0
          %s247 = smul.addr %s31, 4
          %s248 = sadd.s32 %s244, %s247
          %s249 = smul.addr %s248, 2
          %s250 = scalar_lea.hbm %s0, %s249
          %s251 = sshll.u32 %s250, 4
          %s252 = int_to_ptr.hbm [resolvable:$true] %s251
          %s253 = sshll.u32 %s243, 4
          %s254 = int_to_ptr.vmem [resolvable:$true] %s253
          %259 = dma.hbm_to_vmem [thread:$0]  %s252, 128, %s254, %s240, 32, 32, 2
        $region20: #{tpu_custom_call.1} parent=15 // pred_fallthru
          _
        // Predicated region
        $region21: #{tpu_custom_call.1} parent=15 // pred_check
          %p260 = pneg %p97
        $region22: #{tpu_custom_call.1} parent=15 // pred_check_branch
          %262 = sbr.rel (%p260) target = $region24
        $region23: #{tpu_custom_call.1} parent=15 // pred_region
          %s263 = sand.u32 %s24, 1
          %s264 = scalar_lea.sflag [#allocation9], %s263
          %s265 = sand.u32 %s87, 1
          %s266 = smul.addr %s265, 2
          %s267 = scalar_lea.vmem [#allocation8], %s266
          %s268 = sadd.s32 %s32, %s33
          %270 = vsyncadd %s264, 0
          %s271 = sadd.s32 %s268, %s31
          %s272 = smul.addr %s271, 2
          %s273 = scalar_lea.hbm %s1, %s272
          %s275 = sshll.u32 %s273, 4
          %s276 = int_to_ptr.hbm [resolvable:$true] %s275
          %s277 = sshll.u32 %s267, 4
          %s278 = int_to_ptr.vmem [resolvable:$true] %s277
          %280 = dma.hbm_to_vmem [thread:$0]  %s276, 32, %s278, %s264
        $region24: #{tpu_custom_call.1} parent=15 // pred_fallthru
          _
        // Predicated region
        $region25: #{tpu_custom_call.1} parent=15 // pred_check
          %p281 = pneg %p127
        $region26: #{tpu_custom_call.1} parent=15 // pred_check_branch
          %283 = sbr.rel (%p281) target = $region28
        $region27: #{tpu_custom_call.1} parent=15 // pred_region
          %s284 = sand.u32 %s24, 1
          %s285 = scalar_lea.sflag [#allocation9], %s284
          %s286 = sand.u32 %s117, 1
          %s287 = smul.addr %s286, 2
          %s288 = scalar_lea.vmem [#allocation10], %s287
          %s289 = sadd.s32 %s32, %s33
          %291 = vsyncadd %s285, 0
          %s292 = sadd.s32 %s289, %s31
          %s293 = smul.addr %s292, 2
          %s294 = scalar_lea.hbm %s2, %s293
          %s296 = sshll.u32 %s294, 4
          %s297 = int_to_ptr.hbm [resolvable:$true] %s296
          %s298 = sshll.u32 %s288, 4
          %s299 = int_to_ptr.vmem [resolvable:$true] %s298
          %301 = dma.hbm_to_vmem [thread:$0]  %s297, 32, %s299, %s285
        $region28: #{tpu_custom_call.1} parent=15 // pred_fallthru
          _
      $region16: #{tpu_custom_call.1} parent=5 // pred_fallthru
        _
      %p302 = scmp.le.s32.totalorder 1, %s24
      %p303 = scmp.lt.s32.totalorder %s24, 3
      %p304 = pnand %p302, %p303
      %p305 = pneg %p304
      // Predicated region
      $region29: #{tpu_custom_call.1} parent=5 // pred_check
        _
      $region30: #{tpu_custom_call.1} parent=5 // pred_check_branch
        %307 = sbr.rel (%p304) target = $region32
      $region31: #{tpu_custom_call.1} parent=5 // pred_region
        %s308 = ssub.s32 %s24, 1
        %s309 = sand.u32 %s60, 1
        %s310 = scalar_lea.sflag [#allocation6], %s309
        %s311 = sand.u32 %s60, 1
        %s312 = smul.addr %s311, 8
        %s313 = scalar_lea.vmem [#allocation5], %s312
        // Predicated region
        $region33: #{tpu_custom_call.1} parent=31 // pred_check
          %p314 = pneg %p73
        $region34: #{tpu_custom_call.1} parent=31 // pred_check_branch
          %316 = sbr.rel (%p314) target = $region36
        $region35: #{tpu_custom_call.1} parent=31 // pred_region
          %318 = dma.done %s310, 128
        $region36: #{tpu_custom_call.1} parent=31 // pred_fallthru
          _
        %s319 = sand.u32 %s29, 1
        %s320 = scalar_lea.sflag [#allocation9], %s319
        %s321 = sand.u32 %s90, 1
        %s322 = smul.addr %s321, 2
        %s323 = scalar_lea.vmem [#allocation8], %s322
        // Predicated region
        $region37: #{tpu_custom_call.1} parent=31 // pred_check
          %p324 = pneg %p103
        $region38: #{tpu_custom_call.1} parent=31 // pred_check_branch
          %326 = sbr.rel (%p324) target = $region40
        $region39: #{tpu_custom_call.1} parent=31 // pred_region
          %328 = dma.done %s320, 32
        $region40: #{tpu_custom_call.1} parent=31 // pred_fallthru
          _
        %s329 = sand.u32 %s29, 1
        %s330 = scalar_lea.sflag [#allocation9], %s329
        %s331 = sand.u32 %s120, 1
        %s332 = smul.addr %s331, 2
        %s333 = scalar_lea.vmem [#allocation10], %s332
        // Predicated region
        $region41: #{tpu_custom_call.1} parent=31 // pred_check
          %p334 = pneg %p133
        $region42: #{tpu_custom_call.1} parent=31 // pred_check_branch
          %336 = sbr.rel (%p334) target = $region44
        $region43: #{tpu_custom_call.1} parent=31 // pred_region
          %338 = dma.done %s330, 32
        $region44: #{tpu_custom_call.1} parent=31 // pred_fallthru
          _
        %s339 = sand.u32 %s60, 1
        %s340 = scalar_lea.sflag [#allocation6], %s339
        %s341 = sand.u32 %s60, 1
        %s342 = smul.addr %s341, 8
        %s343 = scalar_lea.vmem [#allocation5], %s342
        %p344 = pneg %p73
        %p345 = pneg %p70
        %s346 = sand.u32 %s29, 1
        %s347 = scalar_lea.sflag [#allocation9], %s346
        %s348 = sand.u32 %s90, 1
        %s349 = smul.addr %s348, 2
        %s350 = scalar_lea.vmem [#allocation8], %s349
        %p351 = pneg %p103
        %p352 = pneg %p100
        %s353 = sand.u32 %s29, 1
        %s354 = scalar_lea.sflag [#allocation9], %s353
        %s355 = sand.u32 %s120, 1
        %s356 = smul.addr %s355, 2
        %s357 = scalar_lea.vmem [#allocation10], %s356
        %p358 = pneg %p133
        %p359 = pneg %p130
        %p360 = pneg %p161
        %p361 = pneg %p158
        %s362 = sand.u32 %s148, 1
        %s363 = scalar_lea.sflag [#allocation7], %s362
        %s364 = sand.u32 %s148, 1
        %s365 = smul.addr %s364, 4
        %s366 = scalar_lea.vmem [#allocation11], %s365
        %p367 = pneg %p189
        %p368 = pneg %p186
        %s369 = sand.u32 %s29, 1
        %s370 = scalar_lea.sflag [#allocation13], %s369
        %s371 = sand.u32 %s176, 1
        %s372 = smul.addr %s371, 4
        %s373 = scalar_lea.vmem [#allocation12], %s372
        %p374 = pneg %p217
        %p375 = pneg %p214
        %s376 = sand.u32 %s29, 1
        %s377 = scalar_lea.sflag [#allocation13], %s376
        %s378 = sand.u32 %s204, 1
        %s379 = scalar_lea.vmem [#allocation14], %s378
        %s380 = sadd.s32 %s35, %s36
        %s381 = sadd.s32 %s35, %s36
        %s382 = sadd.s32 %s35, %s36
        %p383 = scmp.eq.s32.totalorder %s36, 0
        // Predicated region
        $region45: #{tpu_custom_call.1} parent=31 // pred_check
          %p384 = pneg %p383
        $region46: #{tpu_custom_call.1} parent=31 // pred_check_branch
          %386 = sbr.rel (%p384) target = $region48
        $region47: #{tpu_custom_call.1} parent=31 // pred_region
          %387 = vst [vmem:[#allocation2] sm:$0x3] 0.0
          %388 = vst [vmem:[#allocation2 + $0x2] sm:$0x3] 0.0
          %389 = vst [vmem:[#allocation2 + $0x4] sm:$0x3] 0.0
          %390 = vst [vmem:[#allocation2 + $0x6] sm:$0x3] 0.0
          %391 = vst [vmem:[#allocation3] sm:$0x3] 0.0
          %392 = vst [vmem:[#allocation3 + $0x2] sm:$0x3] 0.0
          %393 = vst [vmem:[#allocation3 + $0x4] sm:$0x3] 0.0
          %394 = vst [vmem:[#allocation3 + $0x6] sm:$0x3] 0.0
          %395 = vst [vmem:[#allocation4] sm:$0x3] 0.0
        $region48: #{tpu_custom_call.1} parent=31 // pred_fallthru
          _
        %v396 = vld [vmem:[%s323] sm:$0x3]
        %v397 = vld [vmem:[%s333] sm:$0x3]
        %v398 = vld [vmem:[%s313] sm:$0x3]
        %s399 = scalar_lea.vmem %s313, 2 [#allocation5]
        %v400 = vld [vmem:[%s399] sm:$0x3]
        %s401 = scalar_lea.vmem %s313, 4 [#allocation5]
        %v402 = vld [vmem:[%s401] sm:$0x3]
        %s403 = scalar_lea.vmem %s313, 6 [#allocation5]
        %v404 = vld [vmem:[%s403] sm:$0x3]
        %v405 = vmax.f32 %v398, %v400
        %v406 = vmax.f32 %v405, %v402
        %v407 = vmax.f32 %v406, %v404
        %v408 = vsub.f32 %v398, %v407
        %v409 = vmul.f32 %v408, 1.442695
        %v410 = vpow.pop %v409
        %v411 = vsub.f32 %v400, %v407
        %v412 = vmul.f32 %v411, 1.442695
        %v413 = vpow.pop %v412
        %v414 = vsub.f32 %v402, %v407
        %v415 = vmul.f32 %v414, 1.442695
        %v416 = vpow.pop %v415
        %v417 = vsub.f32 %v404, %v407
        %v418 = vmul.f32 %v417, 1.442695
        %v419 = vpow.pop %v418
        %v420 = vadd.f32 %v410, %v413
        %v421 = vadd.f32 %v420, %v416
        %v422 = vadd.f32 %v421, %v419
        %v423 = vrcp.pop %v422
        %v424 = vmul.f32 %v422, %v423
        %v425 = vsub.f32 2.0, %v424
        %v426 = vmul.f32 %v423, %v425
        %v427 = vlog2.pop %v422
        %v428 = vmul.f32 %v427, 0.6931472
        %vm429 = vcmp.eq.s32.totalorder %v396, 0
        %v430 = vmul.f32 %v410, %v426
        %v431 = vsel %vm429, 1, 0
        %v432 = vcvt.s32.f32 %v431
        %v433 = vld [vmem:[#allocation2] sm:$0x3]
        %v434 = vsel %vm429, %v430, 0.0
        %v435 = vadd.f32 %v433, %v434
        %436 = vst [vmem:[#allocation2] sm:$0x3] %v435
        %v437 = vld [vmem:[#allocation3] sm:$0x3]
        %v438 = vadd.f32 %v430, %v432
        %v439 = vadd.f32 %v437, %v438
        %440 = vst [vmem:[#allocation3] sm:$0x3] %v439
        %v441 = vsel %vm429, %v398, 0.0
        %v442 = vadd.f32 %v441, 0.0
        %vm443 = vcmp.eq.s32.totalorder %v396, 1
        %v444 = vmul.f32 %v413, %v426
        %v445 = vsel %vm443, 1, 0
        %v446 = vcvt.s32.f32 %v445
        %s447 = scalar_lea.vmem [#allocation2], 2
        %v448 = vld [vmem:[%s447] sm:$0x3]
        %v449 = vsel %vm443, %v444, 0.0
        %v450 = vadd.f32 %v448, %v449
        %451 = vst [vmem:[%s447] sm:$0x3] %v450
        %s452 = scalar_lea.vmem [#allocation3], 2
        %v453 = vld [vmem:[%s452] sm:$0x3]
        %v454 = vadd.f32 %v444, %v446
        %v455 = vadd.f32 %v453, %v454
        %456 = vst [vmem:[%s452] sm:$0x3] %v455
        %v457 = vsel %vm443, %v400, 0.0
        %v458 = vadd.f32 %v442, %v457
        %vm459 = vcmp.eq.s32.totalorder %v396, 2
        %v460 = vmul.f32 %v416, %v426
        %v461 = vsel %vm459, 1, 0
        %v462 = vcvt.s32.f32 %v461
        %s463 = scalar_lea.vmem [#allocation2], 4
        %v464 = vld [vmem:[%s463] sm:$0x3]
        %v465 = vsel %vm459, %v460, 0.0
        %v466 = vadd.f32 %v464, %v465
        %467 = vst [vmem:[%s463] sm:$0x3] %v466
        %s468 = scalar_lea.vmem [#allocation3], 4
        %v469 = vld [vmem:[%s468] sm:$0x3]
        %v470 = vadd.f32 %v460, %v462
        %v471 = vadd.f32 %v469, %v470
        %472 = vst [vmem:[%s468] sm:$0x3] %v471
        %v473 = vsel %vm459, %v402, 0.0
        %v474 = vadd.f32 %v458, %v473
        %vm475 = vcmp.eq.s32.totalorder %v396, 3
        %v476 = vmul.f32 %v419, %v426
        %v477 = vsel %vm475, 1, 0
        %v478 = vcvt.s32.f32 %v477
        %s479 = scalar_lea.vmem [#allocation2], 6
        %v480 = vld [vmem:[%s479] sm:$0x3]
        %v481 = vsel %vm475, %v476, 0.0
        %v482 = vadd.f32 %v480, %v481
        %483 = vst [vmem:[%s479] sm:$0x3] %v482
        %s484 = scalar_lea.vmem [#allocation3], 6
        %v485 = vld [vmem:[%s484] sm:$0x3]
        %v486 = vadd.f32 %v476, %v478
        %v487 = vadd.f32 %v485, %v486
        %488 = vst [vmem:[%s484] sm:$0x3] %v487
        %v489 = vsel %vm475, %v404, 0.0
        %v490 = vadd.f32 %v474, %v489
        %v491 = vadd.f32 %v407, %v428
        %v492 = vsub.f32 %v491, %v490
        %v493 = vmul.f32 %v492, %v397
        %v494 = vld [vmem:[#allocation4] sm:$0x3]
        %v495 = vadd.f32 %v494, %v493
        %496 = vst [vmem:[#allocation4] sm:$0x3] %v495
        // Predicated region
        $region49: #{tpu_custom_call.1} parent=31 // pred_check
          %p497 = pneg %p383
        $region50: #{tpu_custom_call.1} parent=31 // pred_check_branch
          %499 = sbr.rel (%p497) target = $region52
        $region51: #{tpu_custom_call.1} parent=31 // pred_region
          %v500 = vld [vmem:[#allocation2] sm:$0x3]
          %v501 = vld [vmem:[#allocation2 + $0x2] sm:$0x3]
          %v502 = vld [vmem:[#allocation2 + $0x4] sm:$0x3]
          %v503 = vld [vmem:[#allocation2 + $0x6] sm:$0x3]
          %vm504 = vcmask 1041408
          %v505 = vsel %vm504, %v500, 0.0
          %v506 = vrot.slane %v505, 4
          %v507 = vadd.f32 %v505, %v506
          %v508 = vrot.slane %v507, 2
          %v509 = vadd.f32 %v507, %v508
          %v510 = vrot.slane %v509, 1
          %v511 = vadd.f32 %v509, %v510
          %v512 = vsel %vm504, %v501, 0.0
          %v513 = vrot.slane %v512, 4
          %v514 = vadd.f32 %v512, %v513
          %v515 = vrot.slane %v514, 2
          %v516 = vadd.f32 %v514, %v515
          %v517 = vrot.slane %v516, 1
          %v518 = vadd.f32 %v516, %v517
          %v519 = vsel %vm504, %v502, 0.0
          %v520 = vrot.slane %v519, 4
          %v521 = vadd.f32 %v519, %v520
          %v522 = vrot.slane %v521, 2
          %v523 = vadd.f32 %v521, %v522
          %v524 = vrot.slane %v523, 1
          %v525 = vadd.f32 %v523, %v524
          %v526 = vsel %vm504, %v503, 0.0
          %v527 = vrot.slane %v526, 4
          %v528 = vadd.f32 %v526, %v527
          %v529 = vrot.slane %v528, 2
          %v530 = vadd.f32 %v528, %v529
          %v531 = vrot.slane %v530, 1
          %v532 = vadd.f32 %v530, %v531
          %vm537 = vcmask 1041409
          %v538 = vsel %vm537, %v518, %v511
          %vm539 = vcmask 1042434
          %v540 = vsel %vm539, %v525, %v538
          %vm541 = vcmask 1043459
          %v542 = vsel %vm541, %v532, %v540
          %544 = vst [vmem:[%s366] sm:$0xf] %v542
          %v545 = vld [vmem:[#allocation3] sm:$0x3]
          %v546 = vld [vmem:[#allocation3 + $0x2] sm:$0x3]
          %v547 = vld [vmem:[#allocation3 + $0x4] sm:$0x3]
          %v548 = vld [vmem:[#allocation3 + $0x6] sm:$0x3]
          %v549 = vsel %vm504, %v545, 0.0
          %v550 = vrot.slane %v549, 4
          %v551 = vadd.f32 %v549, %v550
          %v552 = vrot.slane %v551, 2
          %v553 = vadd.f32 %v551, %v552
          %v554 = vrot.slane %v553, 1
          %v555 = vadd.f32 %v553, %v554
          %v556 = vsel %vm504, %v546, 0.0
          %v557 = vrot.slane %v556, 4
          %v558 = vadd.f32 %v556, %v557
          %v559 = vrot.slane %v558, 2
          %v560 = vadd.f32 %v558, %v559
          %v561 = vrot.slane %v560, 1
          %v562 = vadd.f32 %v560, %v561
          %v563 = vsel %vm504, %v547, 0.0
          %v564 = vrot.slane %v563, 4
          %v565 = vadd.f32 %v563, %v564
          %v566 = vrot.slane %v565, 2
          %v567 = vadd.f32 %v565, %v566
          %v568 = vrot.slane %v567, 1
          %v569 = vadd.f32 %v567, %v568
          %v570 = vsel %vm504, %v548, 0.0
          %v571 = vrot.slane %v570, 4
          %v572 = vadd.f32 %v570, %v571
          %v573 = vrot.slane %v572, 2
          %v574 = vadd.f32 %v572, %v573
          %v575 = vrot.slane %v574, 1
          %v576 = vadd.f32 %v574, %v575
          %v581 = vsel %vm537, %v562, %v555
          %v582 = vsel %vm539, %v569, %v581
          %v583 = vsel %vm541, %v576, %v582
          %585 = vst [vmem:[%s373] sm:$0xf] %v583
          %v586 = vld [vmem:[#allocation4] sm:$0x3]
          %v587 = vsel %vm504, %v586, 0.0
          %v588 = vrot.slane %v587, 4
          %v589 = vadd.f32 %v587, %v588
          %v590 = vrot.slane %v589, 2
          %v591 = vadd.f32 %v589, %v590
          %v592 = vrot.slane %v591, 1
          %v593 = vadd.f32 %v591, %v592
          %594 = vst [vmem:[%s379] sm:$0x1] %v593
        $region52: #{tpu_custom_call.1} parent=31 // pred_fallthru
          _
        %s595 = sand.u32 %s148, 1
        %s596 = scalar_lea.sflag [#allocation7], %s595
        %s597 = sand.u32 %s148, 1
        %s598 = smul.addr %s597, 4
        %s599 = scalar_lea.vmem [#allocation11], %s598
        %s600 = sand.u32 %s29, 1
        %s601 = scalar_lea.sflag [#allocation13], %s600
        %s602 = sand.u32 %s176, 1
        %s603 = smul.addr %s602, 4
        %s604 = scalar_lea.vmem [#allocation12], %s603
        %s605 = sand.u32 %s29, 1
        %s606 = scalar_lea.sflag [#allocation13], %s605
        %s607 = sand.u32 %s204, 1
        %s608 = scalar_lea.vmem [#allocation14], %s607
        // Predicated region
        $region53: #{tpu_custom_call.1} parent=31 // pred_check
          %p609 = pneg %p158
        $region54: #{tpu_custom_call.1} parent=31 // pred_check_branch
          %611 = sbr.rel (%p609) target = $region56
        $region55: #{tpu_custom_call.1} parent=31 // pred_region
          %613 = vsyncadd %s596, 0
          %s614 = sadd.s32 %s35, %s34
          %s615 = smul.addr %s614, 4
          %s616 = scalar_lea.hbm %s3, %s615
          %s618 = sshll.u32 %s599, 4
          %s619 = int_to_ptr.vmem [resolvable:$true] %s618
          %s620 = sshll.u32 %s616, 4
          %s621 = int_to_ptr.hbm [resolvable:$true] %s620
          %623 = dma.vmem_to_hbm [thread:$0]  %s619, 64, %s621, %s596
        $region56: #{tpu_custom_call.1} parent=31 // pred_fallthru
          _
        // Predicated region
        $region57: #{tpu_custom_call.1} parent=31 // pred_check
          %p624 = pneg %p186
        $region58: #{tpu_custom_call.1} parent=31 // pred_check_branch
          %626 = sbr.rel (%p624) target = $region60
        $region59: #{tpu_custom_call.1} parent=31 // pred_region
          %628 = vsyncadd %s601, 0
          %s629 = sadd.s32 %s35, %s34
          %s630 = smul.addr %s629, 4
          %s631 = scalar_lea.hbm %s4, %s630
          %s633 = sshll.u32 %s604, 4
          %s634 = int_to_ptr.vmem [resolvable:$true] %s633
          %s635 = sshll.u32 %s631, 4
          %s636 = int_to_ptr.hbm [resolvable:$true] %s635
          %638 = dma.vmem_to_hbm [thread:$0]  %s634, 64, %s636, %s601
        $region60: #{tpu_custom_call.1} parent=31 // pred_fallthru
          _
        // Predicated region
        $region61: #{tpu_custom_call.1} parent=31 // pred_check
          %p639 = pneg %p214
        $region62: #{tpu_custom_call.1} parent=31 // pred_check_branch
          %641 = sbr.rel (%p639) target = $region64
        $region63: #{tpu_custom_call.1} parent=31 // pred_region
          %643 = vsyncadd %s606, 0
          %s644 = sadd.s32 %s35, %s34
          %s645 = scalar_lea.hbm %s5, %s644
          %s647 = sshll.u32 %s608, 4
          %s648 = int_to_ptr.vmem [resolvable:$true] %s647
          %s649 = sshll.u32 %s645, 4
          %s650 = int_to_ptr.hbm [resolvable:$true] %s649
          %652 = dma.vmem_to_hbm [thread:$0]  %s648, 16, %s650, %s606
        $region64: #{tpu_custom_call.1} parent=31 // pred_fallthru
          _
      $region32: #{tpu_custom_call.1} parent=5 // pred_fallthru
        _
      %p653 = scmp.le.s32.totalorder 2, %s24
      // Predicated region
      $region65: #{tpu_custom_call.1} parent=5 // pred_check
        %p654 = pneg %p653
      $region66: #{tpu_custom_call.1} parent=5 // pred_check_branch
        %656 = sbr.rel (%p654) target = $region68
      $region67: #{tpu_custom_call.1} parent=5 // pred_region
        %s657 = ssub.s32 %s24, 2
        // Predicated region
        $region69: #{tpu_custom_call.1} parent=67 // pred_check
          %p658 = pneg %p164
        $region70: #{tpu_custom_call.1} parent=67 // pred_check_branch
          %660 = sbr.rel (%p658) target = $region72
        $region71: #{tpu_custom_call.1} parent=67 // pred_region
          %s661 = sand.u32 %s149, 1
          %s662 = scalar_lea.sflag [#allocation7], %s661
          %s663 = sand.u32 %s149, 1
          %s664 = smul.addr %s663, 4
          %s665 = scalar_lea.vmem [#allocation11], %s664
          %667 = dma.done %s662, 64
        $region72: #{tpu_custom_call.1} parent=67 // pred_fallthru
          _
        // Predicated region
        $region73: #{tpu_custom_call.1} parent=67 // pred_check
          %p668 = pneg %p192
        $region74: #{tpu_custom_call.1} parent=67 // pred_check_branch
          %670 = sbr.rel (%p668) target = $region76
        $region75: #{tpu_custom_call.1} parent=67 // pred_region
          %s671 = sand.u32 %s30, 1
          %s672 = scalar_lea.sflag [#allocation13], %s671
          %s673 = sand.u32 %s177, 1
          %s674 = smul.addr %s673, 4
          %s675 = scalar_lea.vmem [#allocation12], %s674
          %677 = dma.done %s672, 64
        $region76: #{tpu_custom_call.1} parent=67 // pred_fallthru
          _
        // Predicated region
        $region77: #{tpu_custom_call.1} parent=67 // pred_check
          %p678 = pneg %p220
        $region78: #{tpu_custom_call.1} parent=67 // pred_check_branch
          %680 = sbr.rel (%p678) target = $region80
        $region79: #{tpu_custom_call.1} parent=67 // pred_region
          %s681 = sand.u32 %s30, 1
          %s682 = scalar_lea.sflag [#allocation13], %s681
          %s683 = sand.u32 %s205, 1
          %s684 = scalar_lea.vmem [#allocation14], %s683
          %686 = dma.done %s682, 16
        $region80: #{tpu_custom_call.1} parent=67 // pred_fallthru
          _
      $region68: #{tpu_custom_call.1} parent=5 // pred_fallthru
        _
    $region6: #{tpu_custom_call.1} parent=1 // loop_footer
      %s28 = sadd.s32 1, %s24
    $region7: #{tpu_custom_call.1} parent=1 // loop_footer_branch
      %23 = sbr.rel target = $region3
    $region8: #{tpu_custom_call.1} parent=1 // loop_exit
      _
    %687 = vsyncpa [#allocation6], 1
    %s688 = scalar_lea.sflag [#allocation6], 1
    %689 = vsyncpa %s688, 1
    %690 = vsyncpa [#allocation9], 1
    %s691 = scalar_lea.sflag [#allocation9], 1
    %692 = vsyncpa %s691, 1
    %693 = vsyncpa [#allocation7], 1
    %s694 = scalar_lea.sflag [#allocation7], 1
    %695 = vsyncpa %s694, 1
    %696 = vsyncpa [#allocation13], 1
    %s697 = scalar_lea.sflag [#allocation13], 1
    %698 = vsyncpa %s697, 1

</llo_original>
